<compile_context>
chip_gen: v5e
topology: v5e:2x2
jax: 0.10.0
libtpu: 0.0.40
codegen_flags: <defaults>
</compile_context>

<pallas_src>
import jax
import jax.numpy as jnp
from jax import lax
from jax.experimental import pallas as pl
from jax.experimental.pallas import tpu as pltpu

POOL_SIZES = (5, 9, 13)               # module default
_CASCADE_K = 5                        # 5 -> 9 -> 13 via repeated pool5
_NUM_BRANCHES = len(POOL_SIZES) + 1   # 3 pooled branches + identity


def _neg_fill(dtype):
    """Identity element for max in `dtype` (padding value that never wins)."""
    if jnp.issubdtype(dtype, jnp.floating):
        return jnp.asarray(-jnp.inf, dtype=dtype)
    return jnp.asarray(jnp.iinfo(dtype).min, dtype=dtype)


def _pool1d_same(v, k, axis, neg):
    """Stride-1, 'same'-padded 1-D max pool along `axis` (out-of-range = neg)."""
    p = k // 2
    axis = axis % v.ndim
    n = v.shape[axis]
    # One iota per axis (reused for every shift distance along this axis).
    idx = lax.broadcasted_iota(jnp.int32, v.shape, dimension=axis)
    out = v
    for d in range(1, p + 1):
        fwd = pltpu.roll(v, shift=(n - d) % n, axis=axis)   # out[i] = v[i + d]
        fwd = jnp.where(idx + d < n, fwd, neg)
        bwd = pltpu.roll(v, shift=d % n, axis=axis)          # out[i] = v[i - d]
        bwd = jnp.where(idx - d >= 0, bwd, neg)
        out = jnp.maximum(out, jnp.maximum(fwd, bwd))
    return out


def _maxpool2d_same(v, k, neg):
    # Square max window is separable: rows (H, sublane) then cols (W, lane).
    return _pool1d_same(_pool1d_same(v, k, axis=-2, neg=neg), k, axis=-1, neg=neg)


def _spp_kernel(x_ref, o_ref, carry_ref):
    """Grid = (N, C-tiles, 4). Branch axis s (innermost, 'arbitrary'):
       s=0: identity slab (out slot 3), seed the cascade carry.
       s=1..3: carry = pool5(carry) -> pool5 / pool9 / pool13 (out slots 2/1/0)."""
    s = pl.program_id(2)

    @pl.when(s == 0)
    def _():
        x = x_ref[...]
        carry_ref[...] = x
        o_ref[...] = x

    @pl.when(s > 0)
    def _():
        neg = _neg_fill(carry_ref.dtype)
        pooled = _maxpool2d_same(carry_ref[...], _CASCADE_K, neg)
        carry_ref[...] = pooled
        o_ref[...] = pooled


def _pick_c_tile(C, H, W, itemsize, budget_bytes):
    """Largest divisor of C whose (c_tile, H, W) block fits the VMEM budget."""
    per_channel = H * W * itemsize
    best = 1
    for t in range(1, C + 1):
        if C % t == 0 and t * per_channel <= budget_bytes:
            best = t
    return best


def spatial_pyramid_pooling(x, *, block_budget_bytes=2 << 20):
    N, C, H, W = x.shape
    out_c = _NUM_BRANCHES * C

    c_tile = _pick_c_tile(C, H, W, jnp.dtype(x.dtype).itemsize, block_budget_bytes)
    num_c_tiles = C // c_tile

    grid = (N, num_c_tiles, _NUM_BRANCHES)

    # Input block index is independent of the branch axis -> fetched once per
    # (n, c-tile) and kept resident across the 4 branch steps.
    in_spec = pl.BlockSpec((1, c_tile, H, W), lambda n, j, s: (n, j, 0, 0))
    # Output channel slot: s=0 -> identity (3), s=1 -> p5 (2), s=2 -> p9 (1),
    # s=3 -> p13 (0); matches torch.cat([p13, p9, p5, x], dim=1).
    out_spec = pl.BlockSpec(
        (1, c_tile, H, W),
        lambda n, j, s: (n, (_NUM_BRANCHES - 1 - s) * num_c_tiles + j, 0, 0),
    )

    return pl.pallas_call(
        _spp_kernel,
        out_shape=jax.ShapeDtypeStruct((N, out_c, H, W), x.dtype),
        grid_spec=pltpu.PrefetchScalarGridSpec(
            num_scalar_prefetch=0,
            grid=grid,
            in_specs=[in_spec],
            out_specs=out_spec,
            scratch_shapes=[pltpu.VMEM((1, c_tile, H, W), x.dtype)],
        ),
        compiler_params=pltpu.CompilerParams(
            dimension_semantics=("parallel", "parallel", "arbitrary"),
        ),
    )(x)


def _reference(x):
    """Plain-JAX reference mirroring the PyTorch forward."""
    feats = []
    for k in reversed(POOL_SIZES):
        p = k // 2
        pooled = lax.reduce_window(
            x, -jnp.inf, lax.max,
            window_dimensions=(1, 1, k, k),
            window_strides=(1, 1, 1, 1),
            padding=((0, 0), (0, 0), (p, p), (p, p)),
        )
        feats.append(pooled.astype(x.dtype))
    feats.append(x)
    return jnp.concatenate(feats, axis=1)


if __name__ == "__main__":
    key = jax.random.PRNGKey(0)
    x = jax.random.normal(key, (2, 4, 16, 16), dtype=jnp.float32)

    out = jax.block_until_ready(spatial_pyramid_pooling(x))
    ref = jax.block_until_ready(_reference(x))

    assert out.shape == (2, 16, 16, 16), out.shape
    assert jnp.allclose(out, ref, atol=1e-6, rtol=1e-6), "mismatch vs reference"

    print("KERNEL_OK")
</pallas_src>

<mosaic_0001>
module attributes {stable_mosaic.version = 11 : i64} {
  func.func @_spp_kernel(%arg0: i32, %arg1: i32, %arg2: i32, %arg3: memref<1x4x16x16xf32, #tpu.memory_space<vmem>>, %arg4: memref<1x4x16x16xf32, #tpu.memory_space<vmem>>, %arg5: memref<1x4x16x16xf32, #tpu.memory_space<vmem>>) attributes {dimension_semantics = [#tpu.dimension_semantics<parallel>, #tpu.dimension_semantics<parallel>, #tpu.dimension_semantics<arbitrary>], iteration_bounds = array<i64: 2, 1, 4>, scalar_prefetch = 0 : i64, scratch_operands = 1 : i64, tpu.core_type = #tpu.core_type<tc>, window_params = [{transform_indices = @transform_0, window_bounds = array<i64: 1, 4, 16, 16>}, {transform_indices = @transform_1, window_bounds = array<i64: 1, 4, 16, 16>}]} {
    %c0_i32 = arith.constant 0 : i32
    %0 = arith.cmpi eq, %arg2, %c0_i32 : i32
    %1 = arith.extui %0 : i1 to i32
    %c0_i32_0 = arith.constant 0 : i32
    %2 = arith.cmpi ne, %1, %c0_i32_0 : i32
    scf.if %2 {
      %c0 = arith.constant 0 : index
      %c0_3 = arith.constant 0 : index
      %c0_4 = arith.constant 0 : index
      %c0_5 = arith.constant 0 : index
      %6 = vector.load %arg3[%c0, %c0_3, %c0_4, %c0_5] : memref<1x4x16x16xf32, #tpu.memory_space<vmem>>, vector<1x4x16x16xf32>
      %c0_6 = arith.constant 0 : index
      %c0_7 = arith.constant 0 : index
      %c0_8 = arith.constant 0 : index
      %c0_9 = arith.constant 0 : index
      %7 = vector.load %arg5[%c0_6, %c0_7, %c0_8, %c0_9] : memref<1x4x16x16xf32, #tpu.memory_space<vmem>>, vector<1x4x16x16xf32>
      tpu.vector_store %arg5[%c0_6, %c0_7, %c0_8, %c0_9], %6 {strides = array<i32>} : memref<1x4x16x16xf32, #tpu.memory_space<vmem>>, vector<1x4x16x16xf32>,
      %c0_10 = arith.constant 0 : index
      %c0_11 = arith.constant 0 : index
      %c0_12 = arith.constant 0 : index
      %c0_13 = arith.constant 0 : index
      %8 = vector.load %arg4[%c0_10, %c0_11, %c0_12, %c0_13] : memref<1x4x16x16xf32, #tpu.memory_space<vmem>>, vector<1x4x16x16xf32>
      tpu.vector_store %arg4[%c0_10, %c0_11, %c0_12, %c0_13], %6 {strides = array<i32>} : memref<1x4x16x16xf32, #tpu.memory_space<vmem>>, vector<1x4x16x16xf32>,
    } else {
    }
    %c0_i32_1 = arith.constant 0 : i32
    %3 = arith.cmpi sgt, %arg2, %c0_i32_1 : i32
    %4 = arith.extui %3 : i1 to i32
    %c0_i32_2 = arith.constant 0 : i32
    %5 = arith.cmpi ne, %4, %c0_i32_2 : i32
    scf.if %5 {
      %c0 = arith.constant 0 : index
      %c0_3 = arith.constant 0 : index
      %c0_4 = arith.constant 0 : index
      %c0_5 = arith.constant 0 : index
      %6 = vector.load %arg5[%c0, %c0_3, %c0_4, %c0_5] : memref<1x4x16x16xf32, #tpu.memory_space<vmem>>, vector<1x4x16x16xf32>
      %7 = tpu.iota {dimensions = array<i32: 2>} : vector<1x4x16x16xi32>
      %c15_i32 = arith.constant 15 : i32
      %8 = tpu.dynamic_rotate %6 by %c15_i32 dim 2 : vector<1x4x16x16xf32>, i32 -> vector<1x4x16x16xf32>
      %c1_i32 = arith.constant 1 : i32
      %9 = vector.broadcast %c1_i32 : i32 to vector<1x4x16x16xi32>
      %10 = arith.addi %7, %9 : vector<1x4x16x16xi32>
      %c16_i32 = arith.constant 16 : i32
      %11 = vector.broadcast %c16_i32 : i32 to vector<1x4x16x16xi32>
      %12 = arith.cmpi slt, %10, %11 : vector<1x4x16x16xi32>
      %cst = arith.constant 0xFF800000 : f32
      %13 = vector.broadcast %cst : f32 to vector<1x4x16x16xf32>
      %14 = arith.select %12, %8, %13 : vector<1x4x16x16xi1>, vector<1x4x16x16xf32>
      %c1_i32_6 = arith.constant 1 : i32
      %15 = tpu.dynamic_rotate %6 by %c1_i32_6 dim 2 : vector<1x4x16x16xf32>, i32 -> vector<1x4x16x16xf32>
      %c1_i32_7 = arith.constant 1 : i32
      %16 = vector.broadcast %c1_i32_7 : i32 to vector<1x4x16x16xi32>
      %17 = arith.subi %7, %16 : vector<1x4x16x16xi32>
      %c0_i32_8 = arith.constant 0 : i32
      %18 = vector.broadcast %c0_i32_8 : i32 to vector<1x4x16x16xi32>
      %19 = arith.cmpi sge, %17, %18 : vector<1x4x16x16xi32>
      %cst_9 = arith.constant 0xFF800000 : f32
      %20 = vector.broadcast %cst_9 : f32 to vector<1x4x16x16xf32>
      %21 = arith.select %19, %15, %20 : vector<1x4x16x16xi1>, vector<1x4x16x16xf32>
      %22 = arith.maximumf %14, %21 : vector<1x4x16x16xf32>
      %23 = arith.maximumf %6, %22 : vector<1x4x16x16xf32>
      %c14_i32 = arith.constant 14 : i32
      %24 = tpu.dynamic_rotate %6 by %c14_i32 dim 2 : vector<1x4x16x16xf32>, i32 -> vector<1x4x16x16xf32>
      %c2_i32 = arith.constant 2 : i32
      %25 = vector.broadcast %c2_i32 : i32 to vector<1x4x16x16xi32>
      %26 = arith.addi %7, %25 : vector<1x4x16x16xi32>
      %c16_i32_10 = arith.constant 16 : i32
      %27 = vector.broadcast %c16_i32_10 : i32 to vector<1x4x16x16xi32>
      %28 = arith.cmpi slt, %26, %27 : vector<1x4x16x16xi32>
      %cst_11 = arith.constant 0xFF800000 : f32
      %29 = vector.broadcast %cst_11 : f32 to vector<1x4x16x16xf32>
      %30 = arith.select %28, %24, %29 : vector<1x4x16x16xi1>, vector<1x4x16x16xf32>
      %c2_i32_12 = arith.constant 2 : i32
      %31 = tpu.dynamic_rotate %6 by %c2_i32_12 dim 2 : vector<1x4x16x16xf32>, i32 -> vector<1x4x16x16xf32>
      %c2_i32_13 = arith.constant 2 : i32
      %32 = vector.broadcast %c2_i32_13 : i32 to vector<1x4x16x16xi32>
      %33 = arith.subi %7, %32 : vector<1x4x16x16xi32>
      %c0_i32_14 = arith.constant 0 : i32
      %34 = vector.broadcast %c0_i32_14 : i32 to vector<1x4x16x16xi32>
      %35 = arith.cmpi sge, %33, %34 : vector<1x4x16x16xi32>
      %cst_15 = arith.constant 0xFF800000 : f32
      %36 = vector.broadcast %cst_15 : f32 to vector<1x4x16x16xf32>
      %37 = arith.select %35, %31, %36 : vector<1x4x16x16xi1>, vector<1x4x16x16xf32>
      %38 = arith.maximumf %30, %37 : vector<1x4x16x16xf32>
      %39 = arith.maximumf %23, %38 : vector<1x4x16x16xf32>
      %40 = tpu.iota {dimensions = array<i32: 3>} : vector<1x4x16x16xi32>
      %c15_i32_16 = arith.constant 15 : i32
      %41 = tpu.dynamic_rotate %39 by %c15_i32_16 dim 3 : vector<1x4x16x16xf32>, i32 -> vector<1x4x16x16xf32>
      %c1_i32_17 = arith.constant 1 : i32
      %42 = vector.broadcast %c1_i32_17 : i32 to vector<1x4x16x16xi32>
      %43 = arith.addi %40, %42 : vector<1x4x16x16xi32>
      %c16_i32_18 = arith.constant 16 : i32
      %44 = vector.broadcast %c16_i32_18 : i32 to vector<1x4x16x16xi32>
      %45 = arith.cmpi slt, %43, %44 : vector<1x4x16x16xi32>
      %cst_19 = arith.constant 0xFF800000 : f32
      %46 = vector.broadcast %cst_19 : f32 to vector<1x4x16x16xf32>
      %47 = arith.select %45, %41, %46 : vector<1x4x16x16xi1>, vector<1x4x16x16xf32>
      %c1_i32_20 = arith.constant 1 : i32
      %48 = tpu.dynamic_rotate %39 by %c1_i32_20 dim 3 : vector<1x4x16x16xf32>, i32 -> vector<1x4x16x16xf32>
      %c1_i32_21 = arith.constant 1 : i32
      %49 = vector.broadcast %c1_i32_21 : i32 to vector<1x4x16x16xi32>
      %50 = arith.subi %40, %49 : vector<1x4x16x16xi32>
      %c0_i32_22 = arith.constant 0 : i32
      %51 = vector.broadcast %c0_i32_22 : i32 to vector<1x4x16x16xi32>
      %52 = arith.cmpi sge, %50, %51 : vector<1x4x16x16xi32>
      %cst_23 = arith.constant 0xFF800000 : f32
      %53 = vector.broadcast %cst_23 : f32 to vector<1x4x16x16xf32>
      %54 = arith.select %52, %48, %53 : vector<1x4x16x16xi1>, vector<1x4x16x16xf32>
      %55 = arith.maximumf %47, %54 : vector<1x4x16x16xf32>
      %56 = arith.maximumf %39, %55 : vector<1x4x16x16xf32>
      %c14_i32_24 = arith.constant 14 : i32
      %57 = tpu.dynamic_rotate %39 by %c14_i32_24 dim 3 : vector<1x4x16x16xf32>, i32 -> vector<1x4x16x16xf32>
      %c2_i32_25 = arith.constant 2 : i32
      %58 = vector.broadcast %c2_i32_25 : i32 to vector<1x4x16x16xi32>
      %59 = arith.addi %40, %58 : vector<1x4x16x16xi32>
      %c16_i32_26 = arith.constant 16 : i32
      %60 = vector.broadcast %c16_i32_26 : i32 to vector<1x4x16x16xi32>
      %61 = arith.cmpi slt, %59, %60 : vector<1x4x16x16xi32>
      %cst_27 = arith.constant 0xFF800000 : f32
      %62 = vector.broadcast %cst_27 : f32 to vector<1x4x16x16xf32>
      %63 = arith.select %61, %57, %62 : vector<1x4x16x16xi1>, vector<1x4x16x16xf32>
      %c2_i32_28 = arith.constant 2 : i32
      %64 = tpu.dynamic_rotate %39 by %c2_i32_28 dim 3 : vector<1x4x16x16xf32>, i32 -> vector<1x4x16x16xf32>
      %c2_i32_29 = arith.constant 2 : i32
      %65 = vector.broadcast %c2_i32_29 : i32 to vector<1x4x16x16xi32>
      %66 = arith.subi %40, %65 : vector<1x4x16x16xi32>
      %c0_i32_30 = arith.constant 0 : i32
      %67 = vector.broadcast %c0_i32_30 : i32 to vector<1x4x16x16xi32>
      %68 = arith.cmpi sge, %66, %67 : vector<1x4x16x16xi32>
      %cst_31 = arith.constant 0xFF800000 : f32
      %69 = vector.broadcast %cst_31 : f32 to vector<1x4x16x16xf32>
      %70 = arith.select %68, %64, %69 : vector<1x4x16x16xi1>, vector<1x4x16x16xf32>
      %71 = arith.maximumf %63, %70 : vector<1x4x16x16xf32>
      %72 = arith.maximumf %56, %71 : vector<1x4x16x16xf32>
      %c0_32 = arith.constant 0 : index
      %c0_33 = arith.constant 0 : index
      %c0_34 = arith.constant 0 : index
      %c0_35 = arith.constant 0 : index
      %73 = vector.load %arg5[%c0_32, %c0_33, %c0_34, %c0_35] : memref<1x4x16x16xf32, #tpu.memory_space<vmem>>, vector<1x4x16x16xf32>
      tpu.vector_store %arg5[%c0_32, %c0_33, %c0_34, %c0_35], %72 {strides = array<i32>} : memref<1x4x16x16xf32, #tpu.memory_space<vmem>>, vector<1x4x16x16xf32>,
      %c0_36 = arith.constant 0 : index
      %c0_37 = arith.constant 0 : index
      %c0_38 = arith.constant 0 : index
      %c0_39 = arith.constant 0 : index
      %74 = vector.load %arg4[%c0_36, %c0_37, %c0_38, %c0_39] : memref<1x4x16x16xf32, #tpu.memory_space<vmem>>, vector<1x4x16x16xf32>
      tpu.vector_store %arg4[%c0_36, %c0_37, %c0_38, %c0_39], %72 {strides = array<i32>} : memref<1x4x16x16xf32, #tpu.memory_space<vmem>>, vector<1x4x16x16xf32>,
    } else {
    }
    return
  }
  func.func @transform_0(%arg0: i32, %arg1: i32, %arg2: i32) -> (i32, i32, i32, i32) {
    %c0_i32 = arith.constant 0 : i32
    %c0_i32_0 = arith.constant 0 : i32
    %c0_i32_1 = arith.constant 0 : i32
    return %arg0, %arg1, %c0_i32, %c0_i32_0 : i32, i32, i32, i32
  }
  func.func @transform_1(%arg0: i32, %arg1: i32, %arg2: i32) -> (i32, i32, i32, i32) {
    %c3_i32 = arith.constant 3 : i32
    %0 = arith.subi %c3_i32, %arg2 : i32
    %c1_i32 = arith.constant 1 : i32
    %1 = arith.muli %0, %c1_i32 : i32
    %2 = arith.addi %1, %arg1 : i32
    %c0_i32 = arith.constant 0 : i32
    %c0_i32_0 = arith.constant 0 : i32
    %c0_i32_1 = arith.constant 0 : i32
    return %arg0, %2, %c0_i32, %c0_i32_0 : i32, i32, i32, i32
  }
}

</mosaic_0001>

<llo_original>
// kernel: tpu_custom_call.1
$region0: #{tpu_custom_call.1}
  #allocation0 [shape = 'u32[]', space=smem, size = 0x4, offset = 0x4, fixed_abs, tag = 'smem constant byte address 0x4 - core index']
  #allocation1 [shape = 'u32[72,128]{1,0:T(1,128)}', space=vmem, size = 0x9000, scoped, tag = 'internal scratch']
  #allocation2 [shape = 'f32[1,4,16,16]{3,2,1,0:T(8,128)}', space=vmem, size = 0x8000, scoped, tag = 'scratch operand']
  %s0 = inlined_call_operand.hbm [shape: f32[2,4,16,16], index: 0, kind: input, shape index: {}]
  %s1 = inlined_call_operand.hbm [shape: f32[2,16,16,16], index: 1, kind: output, shape index: {}]
  %s2 = sld [smem:[#allocation0]]
  $region49: #{tpu_custom_call.1} parent=0
    _
  %s4 = ssub.s32 1, %s2
  %s5 = scalar_select 0, %s4, %s2
  $region1: #{tpu_custom_call.1} parent=0
    #allocation3 [shape = 'u8[65536]{0}', space=vmem, size = 0x10000, scoped, tag = 'input window, operand 0']
    #allocation4 [shape = 's32[2]{0}', space=sflag, size = 0x8, scoped, tag = 'scoped memory for tpu_custom_call.1']
    #allocation5 [shape = 's32[2]{0}', space=sflag, size = 0x8, scoped, tag = 'scoped memory for tpu_custom_call.1']
    #allocation6 [shape = 'u8[65536]{0}', space=vmem, size = 0x10000, scoped, tag = 'output window, operand 0']
    %6 = vsyncpa [#allocation4], 0
    %s7 = scalar_lea.sflag [#allocation4], 1
    %8 = vsyncpa %s7, 0
    %9 = vsyncpa [#allocation5], 0
    %s10 = scalar_lea.sflag [#allocation5], 1
    %11 = vsyncpa %s10, 0
    loop: start=0, step=1, limit=10
    $region2: #{tpu_custom_call.1} parent=1 // loop_pre_header
      _
    $region3: #{tpu_custom_call.1} parent=1 // loop_header
      %s13 = sphi 0, %s17
      %p14 = scmp.ge.s32.totalorder %s13, 10
      %s20 = sphi 0, %s39
      %s21 = sphi 0, %s35
      %s22 = sphi 0, %s31
      %s23 = sphi 0, %s20
      %s24 = sphi 0, %s21
      %s25 = sphi 0, %s22
      %s26 = sphi 0, %s23
      %s27 = sphi 0, %s24
      %s28 = sphi 0, %s25
      %s44 = sphi 0, %s46
      %s47 = sphi 0, %s44
      %s48 = sphi 0, %s47
      %s64 = sphi 0, %s48
      %s76 = sphi 0, %s78
      %s79 = sphi 0, %s76
      %s80 = sphi 0, %s79
      %s96 = sphi 0, %s80
    $region4: #{tpu_custom_call.1} parent=1 // loop_header_branch
      %16 = sbr.rel (%p14) target = $region8
    $region5: #{tpu_custom_call.1} parent=1 // loop_body
      %s18 = ssub.s32 %s13, 1
      %s19 = ssub.s32 %s13, 2
      %s29 = sadd.s32 1, %s22
      %p30 = scmp.ge.s32.totalorder %s29, 4
      %s31 = scalar_select %p30, 0, %s29
      %s32 = sadd.s32 1, %s21
      %s33 = scalar_select %p30, %s32, %s21
      %p34 = scmp.ge.s32.totalorder %s33, 1
      %s35 = scalar_select %p34, 0, %s33
      %s36 = sadd.s32 1, %s20
      %s37 = scalar_select %p34, %s36, %s20
      %p38 = scmp.ge.s32.totalorder %s37, 2
      %s39 = scalar_select %p38, 0, %s37
      %s40 = ssub.s32 %s20, %s39
      %s41 = ssub.s32 %s21, %s35
      %s42 = sor.u32 %s40, %s41
      %p43 = scmp.eq.s32.totalorder %s42, 0
      %s45 = sadd.s32 %s44, 1
      %s46 = scalar_select %p43, %s44, %s45
      %p49 = pneg %p43
      %p50 = scmp.eq.s32.totalorder %s13, 7
      %p51 = por %p49, %p50
      %p52 = scmp.ne.s32.totalorder %s44, %s47
      %p53 = scmp.eq.s32.totalorder %s13, 0
      %p54 = por %p52, %p53
      %p55 = scmp.ne.s32.totalorder %s44, %s47
      %p56 = scmp.eq.s32.totalorder %s18, 7
      %p57 = por %p55, %p56
      %p58 = scmp.ne.s32.totalorder %s47, %s48
      %p59 = scmp.eq.s32.totalorder %s18, 0
      %p60 = por %p58, %p59
      %p61 = scmp.ne.s32.totalorder %s47, %s48
      %p62 = scmp.eq.s32.totalorder %s19, 7
      %p63 = por %p61, %p62
      %p65 = scmp.ne.s32.totalorder %s48, %s64
      %p66 = scmp.eq.s32.totalorder %s19, 0
      %p67 = por %p65, %p66
      %s68 = ssub.s32 3, %s22
      %s69 = sadd.s32 %s68, %s21
      %s70 = ssub.s32 3, %s31
      %s71 = sadd.s32 %s70, %s35
      %s72 = ssub.s32 %s20, %s39
      %s73 = ssub.s32 %s69, %s71
      %s74 = sor.u32 %s72, %s73
      %p75 = scmp.eq.s32.totalorder %s74, 0
      %s77 = sadd.s32 %s76, 1
      %s78 = scalar_select %p75, %s76, %s77
      %p81 = pneg %p75
      %p82 = scmp.eq.s32.totalorder %s13, 7
      %p83 = por %p81, %p82
      %p84 = scmp.ne.s32.totalorder %s76, %s79
      %p85 = scmp.eq.s32.totalorder %s13, 0
      %p86 = por %p84, %p85
      %p87 = scmp.ne.s32.totalorder %s76, %s79
      %p88 = scmp.eq.s32.totalorder %s18, 7
      %p89 = por %p87, %p88
      %p90 = scmp.ne.s32.totalorder %s79, %s80
      %p91 = scmp.eq.s32.totalorder %s18, 0
      %p92 = por %p90, %p91
      %p93 = scmp.ne.s32.totalorder %s79, %s80
      %p94 = scmp.eq.s32.totalorder %s19, 7
      %p95 = por %p93, %p94
      %p97 = scmp.ne.s32.totalorder %s80, %s96
      %p98 = scmp.eq.s32.totalorder %s19, 0
      %p99 = por %p97, %p98
      %p100 = scmp.le.s32.totalorder 1, %s13
      %p101 = scmp.lt.s32.totalorder %s13, 9
      %p102 = pnand %p100, %p101
      %p103 = pneg %p102
      // Predicated region
      $region9: #{tpu_custom_call.1} parent=5 // pred_check
        _
      $region10: #{tpu_custom_call.1} parent=5 // pred_check_branch
        %105 = sbr.rel (%p102) target = $region12
      $region11: #{tpu_custom_call.1} parent=5 // pred_region
        %s106 = ssub.s32 %s13, 1
      $region12: #{tpu_custom_call.1} parent=5 // pred_fallthru
        _
      %p107 = scmp.lt.s32.totalorder %s13, 8
      // Predicated region
      $region13: #{tpu_custom_call.1} parent=5 // pred_check
        %p108 = pneg %p107
      $region14: #{tpu_custom_call.1} parent=5 // pred_check_branch
        %110 = sbr.rel (%p108) target = $region16
      $region15: #{tpu_custom_call.1} parent=5 // pred_region
        // Predicated region
        $region17: #{tpu_custom_call.1} parent=15 // pred_check
          %p111 = pneg %p54
        $region18: #{tpu_custom_call.1} parent=15 // pred_check_branch
          %113 = sbr.rel (%p111) target = $region20
        $region19: #{tpu_custom_call.1} parent=15 // pred_region
          %s114 = sand.u32 %s44, 1
          %s115 = scalar_lea.sflag [#allocation4], %s114
          %s116 = sand.u32 %s44, 1
          %s117 = smul.addr %s116, 64
          %s118 = scalar_lea.vmem [#allocation3], %s117
          %s119 = smul.u32 4, %s21
          %121 = vsyncadd %s115, 0
          %s122 = smul.addr %s119, 2
          %s123 = smul.addr %s20, 8
          %s124 = sadd.s32 %s122, %s123
          %s125 = smul.addr %s124, 8
          %s126 = scalar_lea.hbm %s0, %s125
          %s127 = sshll.u32 %s126, 4
          %s128 = int_to_ptr.hbm [resolvable:$true] %s127
          %s129 = sshll.u32 %s118, 4
          %s130 = int_to_ptr.vmem [resolvable:$true] %s129
          %135 = dma.hbm_to_vmem [thread:$0]  %s128, 1024, %s130, %s115, 128, 128, 8
        $region20: #{tpu_custom_call.1} parent=15 // pred_fallthru
          _
      $region16: #{tpu_custom_call.1} parent=5 // pred_fallthru
        _
      %p136 = scmp.le.s32.totalorder 1, %s13
      %p137 = scmp.lt.s32.totalorder %s13, 9
      %p138 = pnand %p136, %p137
      %p139 = pneg %p138
      // Predicated region
      $region21: #{tpu_custom_call.1} parent=5 // pred_check
        _
      $region22: #{tpu_custom_call.1} parent=5 // pred_check_branch
        %141 = sbr.rel (%p138) target = $region24
      $region23: #{tpu_custom_call.1} parent=5 // pred_region
        %s142 = ssub.s32 %s13, 1
        %s143 = sand.u32 %s47, 1
        %s144 = scalar_lea.sflag [#allocation4], %s143
        %s145 = sand.u32 %s47, 1
        %s146 = smul.addr %s145, 64
        %s147 = scalar_lea.vmem [#allocation3], %s146
        // Predicated region
        $region25: #{tpu_custom_call.1} parent=23 // pred_check
          %p148 = pneg %p60
        $region26: #{tpu_custom_call.1} parent=23 // pred_check_branch
          %150 = sbr.rel (%p148) target = $region28
        $region27: #{tpu_custom_call.1} parent=23 // pred_region
          %152 = dma.done %s144, 1024
        $region28: #{tpu_custom_call.1} parent=23 // pred_fallthru
          _
        %s153 = sand.u32 %s47, 1
        %s154 = scalar_lea.sflag [#allocation4], %s153
        %s155 = sand.u32 %s47, 1
        %s156 = smul.addr %s155, 64
        %s157 = scalar_lea.vmem [#allocation3], %s156
        %p158 = pneg %p60
        %p159 = pneg %p57
        %p160 = pneg %p92
        %p161 = pneg %p89
        %s162 = sand.u32 %s79, 1
        %s163 = scalar_lea.sflag [#allocation5], %s162
        %s164 = sand.u32 %s79, 1
        %s165 = smul.addr %s164, 64
        %s166 = scalar_lea.vmem [#allocation6], %s165
        %s167 = smul.u32 4, %s24
        %s168 = ssub.s32 3, %s25
        %s169 = sadd.s32 %s168, %s24
        %s170 = smul.u32 4, %s169
        %p171 = scmp.eq.s32.totalorder %s25, 0
        // Predicated region
        $region29: #{tpu_custom_call.1} parent=23 // pred_check
          %p172 = pneg %p171
        $region30: #{tpu_custom_call.1} parent=23 // pred_check_branch
          %174 = sbr.rel (%p172) target = $region32
        $region31: #{tpu_custom_call.1} parent=23 // pred_region
          %v175 = vld [vmem:[%s147] sm:$0xff]
          %v176 = vld [vmem:[%s147 + $0x8] sm:$0xff]
          %v177 = vld [vmem:[%s147 + $0x10] sm:$0xff]
          %v178 = vld [vmem:[%s147 + $0x18] sm:$0xff]
          %v179 = vld [vmem:[%s147 + $0x20] sm:$0xff]
          %v180 = vld [vmem:[%s147 + $0x28] sm:$0xff]
          %v181 = vld [vmem:[%s147 + $0x30] sm:$0xff]
          %v182 = vld [vmem:[%s147 + $0x38] sm:$0xff]
          %vm183 = vcmask 130048
          %184 = vst.msk [vmem:[#allocation2] sm:$0xff] %vm183, %v175
          %185 = vst.msk [vmem:[#allocation2 + $0x8] sm:$0xff] %vm183, %v176
          %186 = vst.msk [vmem:[#allocation2 + $0x10] sm:$0xff] %vm183, %v177
          %187 = vst.msk [vmem:[#allocation2 + $0x18] sm:$0xff] %vm183, %v178
          %188 = vst.msk [vmem:[#allocation2 + $0x20] sm:$0xff] %vm183, %v179
          %189 = vst.msk [vmem:[#allocation2 + $0x28] sm:$0xff] %vm183, %v180
          %190 = vst.msk [vmem:[#allocation2 + $0x30] sm:$0xff] %vm183, %v181
          %191 = vst.msk [vmem:[#allocation2 + $0x38] sm:$0xff] %vm183, %v182
          %192 = vst.msk [vmem:[%s166] sm:$0xff] %vm183, %v175
          %193 = vst.msk [vmem:[%s166 + $0x8] sm:$0xff] %vm183, %v176
          %194 = vst.msk [vmem:[%s166 + $0x10] sm:$0xff] %vm183, %v177
          %195 = vst.msk [vmem:[%s166 + $0x18] sm:$0xff] %vm183, %v178
          %196 = vst.msk [vmem:[%s166 + $0x20] sm:$0xff] %vm183, %v179
          %197 = vst.msk [vmem:[%s166 + $0x28] sm:$0xff] %vm183, %v180
          %198 = vst.msk [vmem:[%s166 + $0x30] sm:$0xff] %vm183, %v181
          %199 = vst.msk [vmem:[%s166 + $0x38] sm:$0xff] %vm183, %v182
        $region32: #{tpu_custom_call.1} parent=23 // pred_fallthru
          _
        %p200 = scmp.gt.s32.totalorder %s25, 0
        // Predicated region
        $region33: #{tpu_custom_call.1} parent=23 // pred_check
          %p201 = pneg %p200
        $region34: #{tpu_custom_call.1} parent=23 // pred_check_branch
          %203 = sbr.rel (%p201) target = $region36
        $region35: #{tpu_custom_call.1} parent=23 // pred_region
          %v204 = vld [vmem:[#allocation2] sm:$0xff]
          %v205 = vld [vmem:[#allocation2 + $0x8] sm:$0xff]
          %v206 = vld [vmem:[#allocation2 + $0x10] sm:$0xff]
          %v207 = vld [vmem:[#allocation2 + $0x18] sm:$0xff]
          %v208 = vld [vmem:[#allocation2 + $0x20] sm:$0xff]
          %v209 = vld [vmem:[#allocation2 + $0x28] sm:$0xff]
          %v210 = vld [vmem:[#allocation2 + $0x30] sm:$0xff]
          %v211 = vld [vmem:[#allocation2 + $0x38] sm:$0xff]
          %v212 = vlaneseq
          %v213 = vshrl.u32 %v212, 7
          %v214 = vadd.s32 %v213, 8
          %v215 = vrot.slane %v204, 1
          %v216 = vrot.slane %v206, 1
          %v217 = vrot.slane %v208, 1
          %v218 = vrot.slane %v210, 1
          %v219 = vrot.slane %v205, 1
          %v220 = vrot.slane %v207, 1
          %v221 = vrot.slane %v209, 1
          %v222 = vrot.slane %v211, 1
          %vm223 = vcmp.lt.s32.totalorder %v213, 7
          %v224 = vsel %vm223, %v215, %v219
          %v225 = vsel %vm223, %v216, %v220
          %v226 = vsel %vm223, %v217, %v221
          %v227 = vsel %vm223, %v218, %v222
          %v228 = vsel %vm223, %v219, %v215
          %v229 = vsel %vm223, %v220, %v216
          %v230 = vsel %vm223, %v221, %v217
          %v231 = vsel %vm223, %v222, %v218
          %v232 = vadd.s32 %v213, 1
          %v233 = vadd.s32 %v214, 1
          %vm234 = vcmp.lt.s32.totalorder %v232, 16
          %vm235 = vcmp.lt.s32.totalorder %v233, 16
          %v236 = vsel %vm234, %v224, -inf
          %v237 = vsel %vm235, %v228, -inf
          %v238 = vsel %vm234, %v225, -inf
          %v239 = vsel %vm235, %v229, -inf
          %v240 = vsel %vm234, %v226, -inf
          %v241 = vsel %vm235, %v230, -inf
          %v242 = vsel %vm234, %v227, -inf
          %v243 = vsel %vm235, %v231, -inf
          %v244 = vrot.slane %v204, 7
          %v245 = vrot.slane %v206, 7
          %v246 = vrot.slane %v208, 7
          %v247 = vrot.slane %v210, 7
          %v248 = vrot.slane %v205, 7
          %v249 = vrot.slane %v207, 7
          %v250 = vrot.slane %v209, 7
          %v251 = vrot.slane %v211, 7
          %vm252 = vcmp.lt.s32.totalorder %v213, 1
          %v253 = vsel %vm252, %v244, %v248
          %v254 = vsel %vm252, %v245, %v249
          %v255 = vsel %vm252, %v246, %v250
          %v256 = vsel %vm252, %v247, %v251
          %v257 = vsel %vm252, %v248, %v244
          %v258 = vsel %vm252, %v249, %v245
          %v259 = vsel %vm252, %v250, %v246
          %v260 = vsel %vm252, %v251, %v247
          %v261 = vsub.s32 %v213, 1
          %v262 = vsub.s32 %v214, 1
          %vm263 = vcmp.ge.s32.totalorder %v261, 0
          %vm264 = vcmp.ge.s32.totalorder %v262, 0
          %v265 = vsel %vm263, %v257, -inf
          %v266 = vsel %vm264, %v253, -inf
          %v267 = vsel %vm263, %v258, -inf
          %v268 = vsel %vm264, %v254, -inf
          %v269 = vsel %vm263, %v259, -inf
          %v270 = vsel %vm264, %v255, -inf
          %v271 = vsel %vm263, %v260, -inf
          %v272 = vsel %vm264, %v256, -inf
          %v273 = vmax.f32 %v236, %v265
          %v274 = vmax.f32 %v237, %v266
          %v275 = vmax.f32 %v238, %v267
          %v276 = vmax.f32 %v239, %v268
          %v277 = vmax.f32 %v240, %v269
          %v278 = vmax.f32 %v241, %v270
          %v279 = vmax.f32 %v242, %v271
          %v280 = vmax.f32 %v243, %v272
          %v281 = vmax.f32 %v204, %v273
          %v282 = vmax.f32 %v205, %v274
          %v283 = vmax.f32 %v206, %v275
          %v284 = vmax.f32 %v207, %v276
          %v285 = vmax.f32 %v208, %v277
          %v286 = vmax.f32 %v209, %v278
          %v287 = vmax.f32 %v210, %v279
          %v288 = vmax.f32 %v211, %v280
          %v289 = vrot.slane %v204, 2
          %v290 = vrot.slane %v206, 2
          %v291 = vrot.slane %v208, 2
          %v292 = vrot.slane %v210, 2
          %v293 = vrot.slane %v205, 2
          %v294 = vrot.slane %v207, 2
          %v295 = vrot.slane %v209, 2
          %v296 = vrot.slane %v211, 2
          %vm297 = vcmp.lt.s32.totalorder %v213, 6
          %v298 = vsel %vm297, %v289, %v293
          %v299 = vsel %vm297, %v290, %v294
          %v300 = vsel %vm297, %v291, %v295
          %v301 = vsel %vm297, %v292, %v296
          %v302 = vsel %vm297, %v293, %v289
          %v303 = vsel %vm297, %v294, %v290
          %v304 = vsel %vm297, %v295, %v291
          %v305 = vsel %vm297, %v296, %v292
          %v306 = vadd.s32 %v213, 2
          %v307 = vadd.s32 %v214, 2
          %vm308 = vcmp.lt.s32.totalorder %v306, 16
          %vm309 = vcmp.lt.s32.totalorder %v307, 16
          %v310 = vsel %vm308, %v298, -inf
          %v311 = vsel %vm309, %v302, -inf
          %v312 = vsel %vm308, %v299, -inf
          %v313 = vsel %vm309, %v303, -inf
          %v314 = vsel %vm308, %v300, -inf
          %v315 = vsel %vm309, %v304, -inf
          %v316 = vsel %vm308, %v301, -inf
          %v317 = vsel %vm309, %v305, -inf
          %v318 = vrot.slane %v204, 6
          %v319 = vrot.slane %v206, 6
          %v320 = vrot.slane %v208, 6
          %v321 = vrot.slane %v210, 6
          %v322 = vrot.slane %v205, 6
          %v323 = vrot.slane %v207, 6
          %v324 = vrot.slane %v209, 6
          %v325 = vrot.slane %v211, 6
          %vm326 = vcmp.lt.s32.totalorder %v213, 2
          %v327 = vsel %vm326, %v318, %v322
          %v328 = vsel %vm326, %v319, %v323
          %v329 = vsel %vm326, %v320, %v324
          %v330 = vsel %vm326, %v321, %v325
          %v331 = vsel %vm326, %v322, %v318
          %v332 = vsel %vm326, %v323, %v319
          %v333 = vsel %vm326, %v324, %v320
          %v334 = vsel %vm326, %v325, %v321
          %v335 = vsub.s32 %v213, 2
          %v336 = vsub.s32 %v214, 2
          %vm337 = vcmp.ge.s32.totalorder %v335, 0
          %vm338 = vcmp.ge.s32.totalorder %v336, 0
          %v339 = vsel %vm337, %v331, -inf
          %v340 = vsel %vm338, %v327, -inf
          %v341 = vsel %vm337, %v332, -inf
          %v342 = vsel %vm338, %v328, -inf
          %v343 = vsel %vm337, %v333, -inf
          %v344 = vsel %vm338, %v329, -inf
          %v345 = vsel %vm337, %v334, -inf
          %v346 = vsel %vm338, %v330, -inf
          %v347 = vmax.f32 %v310, %v339
          %v348 = vmax.f32 %v311, %v340
          %v349 = vmax.f32 %v312, %v341
          %v350 = vmax.f32 %v313, %v342
          %v351 = vmax.f32 %v314, %v343
          %v352 = vmax.f32 %v315, %v344
          %v353 = vmax.f32 %v316, %v345
          %v354 = vmax.f32 %v317, %v346
          %v355 = vmax.f32 %v281, %v347
          %v356 = vmax.f32 %v282, %v348
          %v357 = vmax.f32 %v283, %v349
          %v358 = vmax.f32 %v284, %v350
          %v359 = vmax.f32 %v285, %v351
          %v360 = vmax.f32 %v286, %v352
          %v361 = vmax.f32 %v287, %v353
          %v362 = vmax.f32 %v288, %v354
          %v363 = vlaneseq
          %v364 = vand.u32 %v363, 127
          %vm365 = vcmask 1047680
          %366 = vrot.lane.b32.xlu0 %v355, 16
          %v367 = vpop.permute.xlu0 %366
          %v368 = vsel %vm365, %v367, %v355
          %369 = vrot.lane.b32.xlu0 %v356, 16
          %v370 = vpop.permute.xlu0 %369
          %v371 = vsel %vm365, %v370, %v356
          %372 = vrot.lane.b32.xlu0 %v357, 16
          %v373 = vpop.permute.xlu0 %372
          %v374 = vsel %vm365, %v373, %v357
          %375 = vrot.lane.b32.xlu0 %v358, 16
          %v376 = vpop.permute.xlu0 %375
          %v377 = vsel %vm365, %v376, %v358
          %378 = vrot.lane.b32.xlu0 %v359, 16
          %v379 = vpop.permute.xlu0 %378
          %v380 = vsel %vm365, %v379, %v359
          %381 = vrot.lane.b32.xlu0 %v360, 16
          %v382 = vpop.permute.xlu0 %381
          %v383 = vsel %vm365, %v382, %v360
          %384 = vrot.lane.b32.xlu0 %v361, 16
          %v385 = vpop.permute.xlu0 %384
          %v386 = vsel %vm365, %v385, %v361
          %387 = vrot.lane.b32.xlu0 %v362, 16
          %v388 = vpop.permute.xlu0 %387
          %v389 = vsel %vm365, %v388, %v362
          %390 = vrot.lane.b32.xlu0 %v368, 16
          %v391 = vpop.permute.xlu0 %390
          %392 = vrot.lane.b32.xlu0 %v371, 16
          %v393 = vpop.permute.xlu0 %392
          %394 = vrot.lane.b32.xlu0 %v374, 16
          %v395 = vpop.permute.xlu0 %394
          %396 = vrot.lane.b32.xlu0 %v377, 16
          %v397 = vpop.permute.xlu0 %396
          %398 = vrot.lane.b32.xlu0 %v380, 16
          %v399 = vpop.permute.xlu0 %398
          %400 = vrot.lane.b32.xlu0 %v383, 16
          %v401 = vpop.permute.xlu0 %400
          %402 = vrot.lane.b32.xlu0 %v386, 16
          %v403 = vpop.permute.xlu0 %402
          %404 = vrot.lane.b32.xlu0 %v389, 16
          %v405 = vpop.permute.xlu0 %404
          %v406 = vsel %vm365, %v391, %v355
          %v407 = vsel %vm365, %v393, %v356
          %v408 = vsel %vm365, %v395, %v357
          %v409 = vsel %vm365, %v397, %v358
          %v410 = vsel %vm365, %v399, %v359
          %v411 = vsel %vm365, %v401, %v360
          %v412 = vsel %vm365, %v403, %v361
          %v413 = vsel %vm365, %v405, %v362
          %v414 = vadd.s32 %v364, 1
          %vm415 = vcmp.lt.s32.totalorder %v414, 16
          %424 = vrot.lane.b32.xlu0 %v406, 127
          %v425 = vpop.permute.xlu0 %424
          %426 = vrot.lane.b32.xlu0 %v407, 127
          %v427 = vpop.permute.xlu0 %426
          %428 = vrot.lane.b32.xlu0 %v408, 127
          %v429 = vpop.permute.xlu0 %428
          %430 = vrot.lane.b32.xlu0 %v409, 127
          %v431 = vpop.permute.xlu0 %430
          %432 = vrot.lane.b32.xlu0 %v410, 127
          %v433 = vpop.permute.xlu0 %432
          %434 = vrot.lane.b32.xlu0 %v411, 127
          %v435 = vpop.permute.xlu0 %434
          %436 = vrot.lane.b32.xlu0 %v412, 127
          %v437 = vpop.permute.xlu0 %436
          %438 = vrot.lane.b32.xlu0 %v413, 127
          %v439 = vpop.permute.xlu0 %438
          %v448 = vsel %vm415, %v425, -inf
          %v449 = vsel %vm415, %v427, -inf
          %v450 = vsel %vm415, %v429, -inf
          %v451 = vsel %vm415, %v431, -inf
          %v452 = vsel %vm415, %v433, -inf
          %v453 = vsel %vm415, %v435, -inf
          %v454 = vsel %vm415, %v437, -inf
          %v455 = vsel %vm415, %v439, -inf
          %v456 = vsub.s32 %v364, 1
          %vm457 = vcmp.ge.s32.totalorder %v456, 0
          %458 = vrot.lane.b32.xlu0 %v406, 113
          %v459 = vpop.permute.xlu0 %458
          %460 = vrot.lane.b32.xlu0 %v407, 113
          %v461 = vpop.permute.xlu0 %460
          %462 = vrot.lane.b32.xlu0 %v408, 113
          %v463 = vpop.permute.xlu0 %462
          %464 = vrot.lane.b32.xlu0 %v409, 113
          %v465 = vpop.permute.xlu0 %464
          %466 = vrot.lane.b32.xlu0 %v410, 113
          %v467 = vpop.permute.xlu0 %466
          %468 = vrot.lane.b32.xlu0 %v411, 113
          %v469 = vpop.permute.xlu0 %468
          %470 = vrot.lane.b32.xlu0 %v412, 113
          %v471 = vpop.permute.xlu0 %470
          %472 = vrot.lane.b32.xlu0 %v413, 113
          %v473 = vpop.permute.xlu0 %472
          %v482 = vsel %vm457, %v459, -inf
          %v483 = vsel %vm457, %v461, -inf
          %v484 = vsel %vm457, %v463, -inf
          %v485 = vsel %vm457, %v465, -inf
          %v486 = vsel %vm457, %v467, -inf
          %v487 = vsel %vm457, %v469, -inf
          %v488 = vsel %vm457, %v471, -inf
          %v489 = vsel %vm457, %v473, -inf
          %v490 = vmax.f32 %v448, %v482
          %v491 = vmax.f32 %v449, %v483
          %v492 = vmax.f32 %v450, %v484
          %v493 = vmax.f32 %v451, %v485
          %v494 = vmax.f32 %v452, %v486
          %v495 = vmax.f32 %v453, %v487
          %v496 = vmax.f32 %v454, %v488
          %v497 = vmax.f32 %v455, %v489
          %v498 = vmax.f32 %v355, %v490
          %v499 = vmax.f32 %v356, %v491
          %v500 = vmax.f32 %v357, %v492
          %v501 = vmax.f32 %v358, %v493
          %v502 = vmax.f32 %v359, %v494
          %v503 = vmax.f32 %v360, %v495
          %v504 = vmax.f32 %v361, %v496
          %v505 = vmax.f32 %v362, %v497
          %v506 = vadd.s32 %v364, 2
          %vm507 = vcmp.lt.s32.totalorder %v506, 16
          %508 = vrot.lane.b32.xlu0 %v406, 126
          %v509 = vpop.permute.xlu0 %508
          %510 = vrot.lane.b32.xlu0 %v407, 126
          %v511 = vpop.permute.xlu0 %510
          %512 = vrot.lane.b32.xlu0 %v408, 126
          %v513 = vpop.permute.xlu0 %512
          %514 = vrot.lane.b32.xlu0 %v409, 126
          %v515 = vpop.permute.xlu0 %514
          %516 = vrot.lane.b32.xlu0 %v410, 126
          %v517 = vpop.permute.xlu0 %516
          %518 = vrot.lane.b32.xlu0 %v411, 126
          %v519 = vpop.permute.xlu0 %518
          %520 = vrot.lane.b32.xlu0 %v412, 126
          %v521 = vpop.permute.xlu0 %520
          %522 = vrot.lane.b32.xlu0 %v413, 126
          %v523 = vpop.permute.xlu0 %522
          %v532 = vsel %vm507, %v509, -inf
          %v533 = vsel %vm507, %v511, -inf
          %v534 = vsel %vm507, %v513, -inf
          %v535 = vsel %vm507, %v515, -inf
          %v536 = vsel %vm507, %v517, -inf
          %v537 = vsel %vm507, %v519, -inf
          %v538 = vsel %vm507, %v521, -inf
          %v539 = vsel %vm507, %v523, -inf
          %v540 = vsub.s32 %v364, 2
          %vm541 = vcmp.ge.s32.totalorder %v540, 0
          %542 = vrot.lane.b32.xlu0 %v406, 114
          %v543 = vpop.permute.xlu0 %542
          %544 = vrot.lane.b32.xlu0 %v407, 114
          %v545 = vpop.permute.xlu0 %544
          %546 = vrot.lane.b32.xlu0 %v408, 114
          %v547 = vpop.permute.xlu0 %546
          %548 = vrot.lane.b32.xlu0 %v409, 114
          %v549 = vpop.permute.xlu0 %548
          %550 = vrot.lane.b32.xlu0 %v410, 114
          %v551 = vpop.permute.xlu0 %550
          %552 = vrot.lane.b32.xlu0 %v411, 114
          %v553 = vpop.permute.xlu0 %552
          %554 = vrot.lane.b32.xlu0 %v412, 114
          %v555 = vpop.permute.xlu0 %554
          %556 = vrot.lane.b32.xlu0 %v413, 114
          %v557 = vpop.permute.xlu0 %556
          %v566 = vsel %vm541, %v543, -inf
          %v567 = vsel %vm541, %v545, -inf
          %v568 = vsel %vm541, %v547, -inf
          %v569 = vsel %vm541, %v549, -inf
          %v570 = vsel %vm541, %v551, -inf
          %v571 = vsel %vm541, %v553, -inf
          %v572 = vsel %vm541, %v555, -inf
          %v573 = vsel %vm541, %v557, -inf
          %v574 = vmax.f32 %v532, %v566
          %v575 = vmax.f32 %v533, %v567
          %v576 = vmax.f32 %v534, %v568
          %v577 = vmax.f32 %v535, %v569
          %v578 = vmax.f32 %v536, %v570
          %v579 = vmax.f32 %v537, %v571
          %v580 = vmax.f32 %v538, %v572
          %v581 = vmax.f32 %v539, %v573
          %v582 = vmax.f32 %v498, %v574
          %v583 = vmax.f32 %v499, %v575
          %v584 = vmax.f32 %v500, %v576
          %v585 = vmax.f32 %v501, %v577
          %v586 = vmax.f32 %v502, %v578
          %v587 = vmax.f32 %v503, %v579
          %v588 = vmax.f32 %v504, %v580
          %v589 = vmax.f32 %v505, %v581
          %vm590 = vcmask 130048
          %591 = vst.msk [vmem:[#allocation2] sm:$0xff] %vm590, %v582
          %592 = vst.msk [vmem:[#allocation2 + $0x8] sm:$0xff] %vm590, %v583
          %593 = vst.msk [vmem:[#allocation2 + $0x10] sm:$0xff] %vm590, %v584
          %594 = vst.msk [vmem:[#allocation2 + $0x18] sm:$0xff] %vm590, %v585
          %595 = vst.msk [vmem:[#allocation2 + $0x20] sm:$0xff] %vm590, %v586
          %596 = vst.msk [vmem:[#allocation2 + $0x28] sm:$0xff] %vm590, %v587
          %597 = vst.msk [vmem:[#allocation2 + $0x30] sm:$0xff] %vm590, %v588
          %598 = vst.msk [vmem:[#allocation2 + $0x38] sm:$0xff] %vm590, %v589
          %599 = vst.msk [vmem:[%s166] sm:$0xff] %vm590, %v582
          %600 = vst.msk [vmem:[%s166 + $0x8] sm:$0xff] %vm590, %v583
          %601 = vst.msk [vmem:[%s166 + $0x10] sm:$0xff] %vm590, %v584
          %602 = vst.msk [vmem:[%s166 + $0x18] sm:$0xff] %vm590, %v585
          %603 = vst.msk [vmem:[%s166 + $0x20] sm:$0xff] %vm590, %v586
          %604 = vst.msk [vmem:[%s166 + $0x28] sm:$0xff] %vm590, %v587
          %605 = vst.msk [vmem:[%s166 + $0x30] sm:$0xff] %vm590, %v588
          %606 = vst.msk [vmem:[%s166 + $0x38] sm:$0xff] %vm590, %v589
        $region36: #{tpu_custom_call.1} parent=23 // pred_fallthru
          _
        %s607 = sand.u32 %s79, 1
        %s608 = scalar_lea.sflag [#allocation5], %s607
        %s609 = sand.u32 %s79, 1
        %s610 = smul.addr %s609, 64
        %s611 = scalar_lea.vmem [#allocation6], %s610
        // Predicated region
        $region37: #{tpu_custom_call.1} parent=23 // pred_check
          %p612 = pneg %p89
        $region38: #{tpu_custom_call.1} parent=23 // pred_check_branch
          %614 = sbr.rel (%p612) target = $region40
        $region39: #{tpu_custom_call.1} parent=23 // pred_region
          %s615 = ssub.s32 3, %s25
          %s616 = sadd.s32 %s615, %s24
          %s617 = smul.u32 4, %s616
          %619 = vsyncadd %s608, 0
          %s620 = smul.addr %s617, 2
          %s621 = smul.addr %s23, 32
          %s622 = sadd.s32 %s620, %s621
          %s623 = smul.addr %s622, 8
          %s624 = scalar_lea.hbm %s1, %s623
          %s625 = sshll.u32 %s611, 4
          %s626 = int_to_ptr.vmem [resolvable:$true] %s625
          %s627 = sshll.u32 %s624, 4
          %s628 = int_to_ptr.hbm [resolvable:$true] %s627
          %633 = dma.vmem_to_hbm [thread:$0]  %s626, 1024, %s628, %s608, 128, 128, 8
        $region40: #{tpu_custom_call.1} parent=23 // pred_fallthru
          _
      $region24: #{tpu_custom_call.1} parent=5 // pred_fallthru
        _
      %p634 = scmp.le.s32.totalorder 2, %s13
      // Predicated region
      $region41: #{tpu_custom_call.1} parent=5 // pred_check
        %p635 = pneg %p634
      $region42: #{tpu_custom_call.1} parent=5 // pred_check_branch
        %637 = sbr.rel (%p635) target = $region44
      $region43: #{tpu_custom_call.1} parent=5 // pred_region
        %s638 = ssub.s32 %s13, 2
        // Predicated region
        $region45: #{tpu_custom_call.1} parent=43 // pred_check
          %p639 = pneg %p95
        $region46: #{tpu_custom_call.1} parent=43 // pred_check_branch
          %641 = sbr.rel (%p639) target = $region48
        $region47: #{tpu_custom_call.1} parent=43 // pred_region
          %s642 = sand.u32 %s80, 1
          %s643 = scalar_lea.sflag [#allocation5], %s642
          %s644 = sand.u32 %s80, 1
          %s645 = smul.addr %s644, 64
          %s646 = scalar_lea.vmem [#allocation6], %s645
          %648 = dma.done %s643, 1024
        $region48: #{tpu_custom_call.1} parent=43 // pred_fallthru
          _
      $region44: #{tpu_custom_call.1} parent=5 // pred_fallthru
        _
    $region6: #{tpu_custom_call.1} parent=1 // loop_footer
      %s17 = sadd.s32 1, %s13
    $region7: #{tpu_custom_call.1} parent=1 // loop_footer_branch
      %12 = sbr.rel target = $region3
    $region8: #{tpu_custom_call.1} parent=1 // loop_exit
      _
    %649 = vsyncpa [#allocation4], 1
    %s650 = scalar_lea.sflag [#allocation4], 1
    %651 = vsyncpa %s650, 1
    %652 = vsyncpa [#allocation5], 1
    %s653 = scalar_lea.sflag [#allocation5], 1
    %654 = vsyncpa %s653, 1

</llo_original>
